<compile_context>
chip_gen: v6e
topology: v6e:2x2x1
jax: 0.10.0
libtpu: 0.0.40
codegen_flags: <defaults>
</compile_context>

<pallas_src>
import functools

import jax
import jax.numpy as jnp
from jax.experimental import pallas as pl
from jax.experimental.pallas import tpu as pltpu


# ----------------------------------------------------------------------------
# In-kernel helpers
# ----------------------------------------------------------------------------
def _matmul_bias(x_f32, w_ref, b_ref):
    """f32 activations x bf16 weights on the MXU, f32 accumulate, f32 bias add."""
    y = jnp.dot(x_f32.astype(jnp.bfloat16), w_ref[...],
                preferred_element_type=jnp.float32)
    return y + b_ref[...]  # b is [1, N] f32 -> broadcasts over batch


def _relu(y):
    return jnp.maximum(y, 0.0)


def _sigmoid(y):
    # exp and reciprocal both issue on the EUP slot (free next to the VPU work).
    return pl.reciprocal(1.0 + jnp.exp(-y), approx=True)


# ----------------------------------------------------------------------------
# Fused per-phase kernels (single pallas_call each, everything VMEM-resident)
# ----------------------------------------------------------------------------
def _ae_kernel(x_ref, ew1, eb1, ew2, eb2, dw1, db1, dw2, db2,
               xrec_ref, z_ref):
    x = x_ref[...]
    h_e = _relu(_matmul_bias(x, ew1, eb1))          # encoder hidden
    z = _matmul_bias(h_e, ew2, eb2)                 # latent
    h_d = _relu(_matmul_bias(z, dw1, db1))          # decoder hidden
    x_rec = _sigmoid(_matmul_bias(h_d, dw2, db2))   # reconstruction
    xrec_ref[...] = x_rec.astype(xrec_ref.dtype)
    z_ref[...] = z.astype(z_ref.dtype)


def _prior_kernel(y_ref, pw, pb, dw1, db1, dw2, db2, x_ref):
    y = y_ref[...]
    z_prior = jnp.tanh(_matmul_bias(y, pw, pb))
    h_d = _relu(_matmul_bias(z_prior, dw1, db1))
    x_ref[...] = _sigmoid(_matmul_bias(h_d, dw2, db2)).astype(x_ref.dtype)


def _gan_gen_kernel(x_ref, ew1, eb1, ew2, eb2, cw1, cb1, cw2, cb2, s_ref):
    x = x_ref[...]
    h_e = _relu(_matmul_bias(x, ew1, eb1))
    z_gen = _matmul_bias(h_e, ew2, eb2)
    h_c = _relu(_matmul_bias(z_gen, cw1, cb1))
    s_ref[...] = _matmul_bias(h_c, cw2, cb2).astype(s_ref.dtype)


def _gan_disc_kernel(x_ref, zp_ref, ew1, eb1, ew2, eb2, cw1, cb1, cw2, cb2,
                     gen_ref, prior_ref, zgen_ref):
    x = x_ref[...]
    h_e = _relu(_matmul_bias(x, ew1, eb1))
    z_gen = _matmul_bias(h_e, ew2, eb2)                       # [B, lat]
    z_cat = jnp.concatenate([z_gen, zp_ref[...]], axis=0)     # [2B, lat]
    h_c = _relu(_matmul_bias(z_cat, cw1, cb1))                # single disc pass
    scores = _matmul_bias(h_c, cw2, cb2)                      # [2B, 1]
    B = gen_ref.shape[0]
    gen_ref[...] = scores[:B].astype(gen_ref.dtype)
    prior_ref[...] = scores[B:].astype(prior_ref.dtype)
    zgen_ref[...] = z_gen.astype(zgen_ref.dtype)


# ----------------------------------------------------------------------------
# Grid-less pallas_call helper: whole arrays, VMEM-resident, no pipeline.
# ----------------------------------------------------------------------------
def _vmem_call(kernel, out_shape, *args):
    multi = isinstance(out_shape, (tuple, list))
    vspec = lambda: pl.BlockSpec(memory_space=pltpu.MemorySpace.VMEM)
    out_specs = tuple(vspec() for _ in out_shape) if multi else vspec()
    return pl.pallas_call(
        kernel,
        out_shape=tuple(out_shape) if multi else out_shape,
        in_specs=[vspec() for _ in args],
        out_specs=out_specs,
    )(*args)


# ----------------------------------------------------------------------------
# Deterministic parameter construction (bf16 weights, f32 [1, N] biases).
# ----------------------------------------------------------------------------
def make_params(in_dim, hid_dim, lat_dim, n_classes):
    keys = jax.random.split(jax.random.PRNGKey(0), 14)

    def lin(kw, kb, fan_in, fan_out):
        scale = 1.0 / jnp.sqrt(jnp.float32(fan_in))
        w = jax.random.uniform(kw, (fan_in, fan_out), jnp.float32, -scale, scale)
        b = jax.random.uniform(kb, (fan_out,), jnp.float32, -scale, scale)
        return w.astype(jnp.bfloat16), b.reshape(1, fan_out).astype(jnp.float32)

    return {
        # encoder: flatten -> hid (ReLU) -> latent
        "enc1": lin(keys[0], keys[1], in_dim, hid_dim),
        "enc2": lin(keys[2], keys[3], hid_dim, lat_dim),
        # decoder: latent -> hid (ReLU) -> in_dim (sigmoid)
        "dec1": lin(keys[4], keys[5], lat_dim, hid_dim),
        "dec2": lin(keys[6], keys[7], hid_dim, in_dim),
        # discriminator: latent -> hid (ReLU) -> 1
        "disc1": lin(keys[8], keys[9], lat_dim, hid_dim),
        "disc2": lin(keys[10], keys[11], hid_dim, 1),
        # prior: one-hot label embedding -> latent (tanh)
        "prior_emb": lin(keys[12], keys[13], n_classes, lat_dim),
    }


# ----------------------------------------------------------------------------
# jit'ed per-phase forwards (one fused Pallas kernel each)
# ----------------------------------------------------------------------------
@jax.jit
def forward_ae(params, x):
    B = x.shape[0]
    x_flat = x.reshape(B, -1).astype(jnp.float32)
    in_dim = x_flat.shape[1]
    lat_dim = params["enc2"][0].shape[1]
    out_shape = (jax.ShapeDtypeStruct((B, in_dim), jnp.float32),
                 jax.ShapeDtypeStruct((B, lat_dim), jnp.float32))
    x_rec_flat, z = _vmem_call(
        _ae_kernel, out_shape, x_flat,
        *params["enc1"], *params["enc2"],
        *params["dec1"], *params["dec2"])
    return x_rec_flat.reshape(x.shape), z


@functools.partial(jax.jit, static_argnames=("img_shape",))
def forward_prior(params, y_onehot, img_shape):
    B = y_onehot.shape[0]
    in_dim = params["dec2"][0].shape[1]
    out_shape = jax.ShapeDtypeStruct((B, in_dim), jnp.float32)
    x_flat = _vmem_call(
        _prior_kernel, out_shape, y_onehot.astype(jnp.float32),
        *params["prior_emb"], *params["dec1"], *params["dec2"])
    return x_flat.reshape((B,) + tuple(img_shape))


@jax.jit
def forward_gan_gen(params, x):
    B = x.shape[0]
    x_flat = x.reshape(B, -1).astype(jnp.float32)
    out_shape = jax.ShapeDtypeStruct((B, 1), jnp.float32)
    return _vmem_call(
        _gan_gen_kernel, out_shape, x_flat,
        *params["enc1"], *params["enc2"],
        *params["disc1"], *params["disc2"])


@jax.jit
def forward_gan_disc(params, x, key):
    B = x.shape[0]
    lat_dim = params["enc2"][0].shape[1]
    n_classes = params["prior_emb"][0].shape[0]
    kz, ky = jax.random.split(key)
    # prior() with no args: fresh uniform latent + random one-hot label.
    z_prior = jax.random.uniform(kz, (B, lat_dim), jnp.float32, -1.0, 1.0)
    _y_prior = jax.nn.one_hot(
        jax.random.randint(ky, (B,), 0, n_classes), n_classes,
        dtype=jnp.float32)  # sampled for fidelity; not returned by forward()
    x_flat = x.reshape(B, -1).astype(jnp.float32)
    out_shape = (jax.ShapeDtypeStruct((B, 1), jnp.float32),
                 jax.ShapeDtypeStruct((B, 1), jnp.float32),
                 jax.ShapeDtypeStruct((B, lat_dim), jnp.float32))
    gen_score, prior_score, z_gen = _vmem_call(
        _gan_disc_kernel, out_shape, x_flat, z_prior,
        *params["enc1"], *params["enc2"],
        *params["disc1"], *params["disc2"])
    return gen_score, prior_score, z_gen, z_prior


# ----------------------------------------------------------------------------
# AbstractionAutoencoder.forward (phase dispatch) — faithful to the PyTorch code
# ----------------------------------------------------------------------------
def abstraction_autoencoder_forward(params, x=None, y=None, phase=None,
                                    img_shape=None,
                                    key=jax.random.PRNGKey(42)):
    if phase == "ae":
        return forward_ae(params, x)
    elif phase == "prior":
        return forward_prior(params, y, tuple(img_shape))
    elif phase == "gan_gen":
        return forward_gan_gen(params, x)
    elif phase == "gan_disc":
        return forward_gan_disc(params, x, key)
    else:
        raise NotImplementedError


if __name__ == "__main__":
    # Small shapes consistent with the module's forward semantics.
    B, C, H, W = 2, 1, 16, 16
    in_dim = C * H * W       # 256 (lane-dense multiple of 128)
    hid_dim = 32
    lat_dim = 8
    n_classes = 4

    params = make_params(in_dim, hid_dim, lat_dim, n_classes)

    key = jax.random.PRNGKey(0)
    kx, ky = jax.random.split(key)
    x = jax.random.uniform(kx, (B, C, H, W), jnp.float32)          # NCHW images
    y_idx = jax.random.randint(ky, (B,), 0, n_classes)
    y_onehot = jax.nn.one_hot(y_idx, n_classes, dtype=jnp.float32)

    # phase = 'ae'
    x_rec, z = abstraction_autoencoder_forward(params, x=x, phase="ae")
    jax.block_until_ready((x_rec, z))
    assert x_rec.shape == (B, C, H, W) and z.shape == (B, lat_dim)
    assert bool(jnp.all(jnp.isfinite(x_rec))) and bool(jnp.all(jnp.isfinite(z)))

    # phase = 'prior'
    x_prior = abstraction_autoencoder_forward(
        params, y=y_onehot, phase="prior", img_shape=(C, H, W))
    jax.block_until_ready(x_prior)
    assert x_prior.shape == (B, C, H, W)

    # phase = 'gan_gen'
    gen_score = abstraction_autoencoder_forward(params, x=x, phase="gan_gen")
    jax.block_until_ready(gen_score)
    assert gen_score.shape == (B, 1)

    # phase = 'gan_disc'
    gen_s, prior_s, z_gen, z_prior = abstraction_autoencoder_forward(
        params, x=x, phase="gan_disc", key=jax.random.PRNGKey(7))
    jax.block_until_ready((gen_s, prior_s, z_gen, z_prior))
    assert gen_s.shape == (B, 1) and prior_s.shape == (B, 1)
    assert z_gen.shape == (B, lat_dim) and z_prior.shape == (B, lat_dim)

    print("KERNEL_OK")
</pallas_src>

<mosaic_0001>
module attributes {stable_mosaic.version = 11 : i64} {
  func.func @_ae_kernel(%arg0: memref<2x256xf32, #tpu.memory_space<vmem>>, %arg1: memref<256x32xbf16, #tpu.memory_space<vmem>>, %arg2: memref<1x32xf32, #tpu.memory_space<vmem>>, %arg3: memref<32x8xbf16, #tpu.memory_space<vmem>>, %arg4: memref<1x8xf32, #tpu.memory_space<vmem>>, %arg5: memref<8x32xbf16, #tpu.memory_space<vmem>>, %arg6: memref<1x32xf32, #tpu.memory_space<vmem>>, %arg7: memref<32x256xbf16, #tpu.memory_space<vmem>>, %arg8: memref<1x256xf32, #tpu.memory_space<vmem>>, %arg9: memref<2x256xf32, #tpu.memory_space<vmem>>, %arg10: memref<2x8xf32, #tpu.memory_space<vmem>>) attributes {dimension_semantics = [], scalar_prefetch = 0 : i64, scratch_operands = 0 : i64, tpu.core_type = #tpu.core_type<tc>} {
    %c0 = arith.constant 0 : index
    %c0_0 = arith.constant 0 : index
    %0 = vector.load %arg0[%c0, %c0_0] : memref<2x256xf32, #tpu.memory_space<vmem>>, vector<2x256xf32>
    %1 = arith.truncf %0 : vector<2x256xf32> to vector<2x256xbf16>
    %c0_1 = arith.constant 0 : index
    %c0_2 = arith.constant 0 : index
    %2 = vector.load %arg1[%c0_1, %c0_2] : memref<256x32xbf16, #tpu.memory_space<vmem>>, vector<256x32xbf16>
    %cst = arith.constant dense<0.000000e+00> : vector<2x32xf32>
    %3 = tpu.matmul %1, %2, %cst {dimension_numbers = #tpu.dot_dimension_numbers<[1], [0], [0], [1], [0, 0, 1, 1], [], []>} : vector<2x256xbf16>, vector<256x32xbf16>, vector<2x32xf32> -> vector<2x32xf32>
    %c0_3 = arith.constant 0 : index
    %c0_4 = arith.constant 0 : index
    %4 = vector.load %arg2[%c0_3, %c0_4] : memref<1x32xf32, #tpu.memory_space<vmem>>, vector<1x32xf32>
    %5 = vector.broadcast %4 : vector<1x32xf32> to vector<2x32xf32>
    %6 = arith.addf %3, %5 : vector<2x32xf32>
    %cst_5 = arith.constant 0.000000e+00 : f32
    %7 = vector.broadcast %cst_5 : f32 to vector<2x32xf32>
    %8 = arith.maximumf %6, %7 : vector<2x32xf32>
    %9 = arith.truncf %8 : vector<2x32xf32> to vector<2x32xbf16>
    %c0_6 = arith.constant 0 : index
    %c0_7 = arith.constant 0 : index
    %10 = vector.load %arg3[%c0_6, %c0_7] : memref<32x8xbf16, #tpu.memory_space<vmem>>, vector<32x8xbf16>
    %cst_8 = arith.constant dense<0.000000e+00> : vector<2x8xf32>
    %11 = tpu.matmul %9, %10, %cst_8 {dimension_numbers = #tpu.dot_dimension_numbers<[1], [0], [0], [1], [0, 0, 1, 1], [], []>} : vector<2x32xbf16>, vector<32x8xbf16>, vector<2x8xf32> -> vector<2x8xf32>
    %c0_9 = arith.constant 0 : index
    %c0_10 = arith.constant 0 : index
    %12 = vector.load %arg4[%c0_9, %c0_10] : memref<1x8xf32, #tpu.memory_space<vmem>>, vector<1x8xf32>
    %13 = vector.broadcast %12 : vector<1x8xf32> to vector<2x8xf32>
    %14 = arith.addf %11, %13 : vector<2x8xf32>
    %15 = arith.truncf %14 : vector<2x8xf32> to vector<2x8xbf16>
    %c0_11 = arith.constant 0 : index
    %c0_12 = arith.constant 0 : index
    %16 = vector.load %arg5[%c0_11, %c0_12] : memref<8x32xbf16, #tpu.memory_space<vmem>>, vector<8x32xbf16>
    %cst_13 = arith.constant dense<0.000000e+00> : vector<2x32xf32>
    %17 = tpu.matmul %15, %16, %cst_13 {dimension_numbers = #tpu.dot_dimension_numbers<[1], [0], [0], [1], [0, 0, 1, 1], [], []>} : vector<2x8xbf16>, vector<8x32xbf16>, vector<2x32xf32> -> vector<2x32xf32>
    %c0_14 = arith.constant 0 : index
    %c0_15 = arith.constant 0 : index
    %18 = vector.load %arg6[%c0_14, %c0_15] : memref<1x32xf32, #tpu.memory_space<vmem>>, vector<1x32xf32>
    %19 = vector.broadcast %18 : vector<1x32xf32> to vector<2x32xf32>
    %20 = arith.addf %17, %19 : vector<2x32xf32>
    %cst_16 = arith.constant 0.000000e+00 : f32
    %21 = vector.broadcast %cst_16 : f32 to vector<2x32xf32>
    %22 = arith.maximumf %20, %21 : vector<2x32xf32>
    %23 = arith.truncf %22 : vector<2x32xf32> to vector<2x32xbf16>
    %c0_17 = arith.constant 0 : index
    %c0_18 = arith.constant 0 : index
    %24 = vector.load %arg7[%c0_17, %c0_18] : memref<32x256xbf16, #tpu.memory_space<vmem>>, vector<32x256xbf16>
    %cst_19 = arith.constant dense<0.000000e+00> : vector<2x256xf32>
    %25 = tpu.matmul %23, %24, %cst_19 {dimension_numbers = #tpu.dot_dimension_numbers<[1], [0], [0], [1], [0, 0, 1, 1], [], []>} : vector<2x32xbf16>, vector<32x256xbf16>, vector<2x256xf32> -> vector<2x256xf32>
    %c0_20 = arith.constant 0 : index
    %c0_21 = arith.constant 0 : index
    %26 = vector.load %arg8[%c0_20, %c0_21] : memref<1x256xf32, #tpu.memory_space<vmem>>, vector<1x256xf32>
    %27 = vector.broadcast %26 : vector<1x256xf32> to vector<2x256xf32>
    %28 = arith.addf %25, %27 : vector<2x256xf32>
    %cst_22 = arith.constant 0.000000e+00 : f32
    %29 = vector.broadcast %cst_22 : f32 to vector<2x256xf32>
    %30 = arith.subf %29, %28 : vector<2x256xf32>
    %31 = math.exp %30 : vector<2x256xf32>
    %cst_23 = arith.constant 1.000000e+00 : f32
    %32 = vector.broadcast %cst_23 : f32 to vector<2x256xf32>
    %33 = arith.addf %32, %31 : vector<2x256xf32>
    %34 = tpu.reciprocal %33 {approx = true} : vector<2x256xf32> -> vector<2x256xf32>
    %c0_24 = arith.constant 0 : index
    %c0_25 = arith.constant 0 : index
    %35 = vector.load %arg9[%c0_24, %c0_25] : memref<2x256xf32, #tpu.memory_space<vmem>>, vector<2x256xf32>
    tpu.vector_store %arg9[%c0_24, %c0_25], %34 {strides = array<i32>} : memref<2x256xf32, #tpu.memory_space<vmem>>, vector<2x256xf32>,
    %c0_26 = arith.constant 0 : index
    %c0_27 = arith.constant 0 : index
    %36 = vector.load %arg10[%c0_26, %c0_27] : memref<2x8xf32, #tpu.memory_space<vmem>>, vector<2x8xf32>
    tpu.vector_store %arg10[%c0_26, %c0_27], %14 {strides = array<i32>} : memref<2x8xf32, #tpu.memory_space<vmem>>, vector<2x8xf32>,
    return
  }
}

</mosaic_0001>

<llo_original>
// kernel: forward_ae.1
$region0: #{forward_ae.1}
  #allocation0 [shape = 'u32[]', space=smem, size = 0x4, offset = 0x4, fixed_abs, tag = 'smem constant byte address 0x4 - core index']
  #allocation1 [shape = 'u32[144,128]{1,0:T(1,128)}', space=vmem, size = 0x12000, scoped, tag = 'internal scratch']
  %s0 = inlined_call_operand.vmem [shape: f32[2,256], index: 0, kind: input, shape index: {}]
  %s1 = inlined_call_operand.vmem [shape: bf16[256,32], index: 1, kind: input, shape index: {}]
  %s2 = inlined_call_operand.vmem [shape: f32[1,32], index: 2, kind: input, shape index: {}]
  %s3 = inlined_call_operand.vmem [shape: bf16[32,8], index: 3, kind: input, shape index: {}]
  %s4 = inlined_call_operand.vmem [shape: f32[1,8], index: 4, kind: input, shape index: {}]
  %s5 = inlined_call_operand.vmem [shape: bf16[8,32], index: 5, kind: input, shape index: {}]
  %s6 = inlined_call_operand.vmem [shape: f32[1,32], index: 6, kind: input, shape index: {}]
  %s7 = inlined_call_operand.vmem [shape: bf16[32,256], index: 7, kind: input, shape index: {}]
  %s8 = inlined_call_operand.vmem [shape: f32[1,256], index: 8, kind: input, shape index: {}]
  %s9 = inlined_call_operand.vmem [shape: f32[2,256], index: 9, kind: output, shape index: {0}]
  %s10 = inlined_call_operand.hbm [shape: f32[2,8], index: 10, kind: output, shape index: {1}]
  %11 = xla_tuple %s9, %s10
  %s12 = sld [smem:[#allocation0]]
  $region54: #{forward_ae.1} parent=0
    _
  %s14 = ssub.s32 1, %s12
  %s15 = scalar_select 0, %s14, %s12
  $region1: #{forward_ae.1} parent=0
    #allocation2 [shape = 'u8[1024]{0}', space=vmem, size = 0x400, scoped, tag = 'output window, operand 1, single buffered']
    #allocation3 [shape = 's32[1]{0}', space=sflag, size = 0x4, scoped, tag = 'scoped memory for forward_ae.1']
    %16 = vsyncpa [#allocation3], 0
    // Predicated region
    $region2: #{forward_ae.1} parent=1 // pred_check
      _
    $region3: #{forward_ae.1} parent=1 // pred_check_branch
      %18 = sbr.rel (0) target = $region5
    $region4: #{forward_ae.1} parent=1 // pred_region
      _
    $region5: #{forward_ae.1} parent=1 // pred_fallthru
      _
    // Predicated region
    $region6: #{forward_ae.1} parent=1 // pred_check
      _
    $region7: #{forward_ae.1} parent=1 // pred_check_branch
      %20 = sbr.rel (0) target = $region9
    $region8: #{forward_ae.1} parent=1 // pred_region
      _
    $region9: #{forward_ae.1} parent=1 // pred_fallthru
      _
    // Predicated region
    $region10: #{forward_ae.1} parent=1 // pred_check
      _
    $region11: #{forward_ae.1} parent=1 // pred_check_branch
      %22 = sbr.rel (0) target = $region13
    $region12: #{forward_ae.1} parent=1 // pred_region
      _
    $region13: #{forward_ae.1} parent=1 // pred_fallthru
      _
    // Predicated region
    $region14: #{forward_ae.1} parent=1 // pred_check
      _
    $region15: #{forward_ae.1} parent=1 // pred_check_branch
      %24 = sbr.rel (0) target = $region17
    $region16: #{forward_ae.1} parent=1 // pred_region
      _
    $region17: #{forward_ae.1} parent=1 // pred_fallthru
      _
    // Predicated region
    $region18: #{forward_ae.1} parent=1 // pred_check
      _
    $region19: #{forward_ae.1} parent=1 // pred_check_branch
      %26 = sbr.rel (0) target = $region21
    $region20: #{forward_ae.1} parent=1 // pred_region
      _
    $region21: #{forward_ae.1} parent=1 // pred_fallthru
      _
    // Predicated region
    $region22: #{forward_ae.1} parent=1 // pred_check
      _
    $region23: #{forward_ae.1} parent=1 // pred_check_branch
      %28 = sbr.rel (0) target = $region25
    $region24: #{forward_ae.1} parent=1 // pred_region
      _
    $region25: #{forward_ae.1} parent=1 // pred_fallthru
      _
    // Predicated region
    $region26: #{forward_ae.1} parent=1 // pred_check
      _
    $region27: #{forward_ae.1} parent=1 // pred_check_branch
      %30 = sbr.rel (0) target = $region29
    $region28: #{forward_ae.1} parent=1 // pred_region
      _
    $region29: #{forward_ae.1} parent=1 // pred_fallthru
      _
    // Predicated region
    $region30: #{forward_ae.1} parent=1 // pred_check
      _
    $region31: #{forward_ae.1} parent=1 // pred_check_branch
      %32 = sbr.rel (0) target = $region33
    $region32: #{forward_ae.1} parent=1 // pred_region
      _
    $region33: #{forward_ae.1} parent=1 // pred_fallthru
      _
    // Predicated region
    $region34: #{forward_ae.1} parent=1 // pred_check
      _
    $region35: #{forward_ae.1} parent=1 // pred_check_branch
      %34 = sbr.rel (0) target = $region37
    $region36: #{forward_ae.1} parent=1 // pred_region
      _
    $region37: #{forward_ae.1} parent=1 // pred_fallthru
      _
    %v36 = vld [vmem:[%s0] sm:$0xf]
    %v39 = vunpack.c.l.s4 1983009808
    %v40 = vunpack.c.0.s8 %v39
    %v41 = vlaneseq
    %v42 = vshrl.u32 %v41, 7
    %v43 = vsub.s32 %v40, %v42
    %v44 = vrot.slane %v36, %v43
    %v45 = vcombine.high %v44, %v44
    %v48 = vpack.c.bf16 %v44, %v44
    %v49 = vpack.c.bf16 %v45, %v45
    %v50 = vld [vmem:[%s1] sm:$0xf]
    %v51 = vld [vmem:[%s1 + $0x4] sm:$0xf]
    %v52 = vld [vmem:[%s1 + $0x8] sm:$0xf]
    %v53 = vld [vmem:[%s1 + $0xc] sm:$0xf]
    %v54 = vld [vmem:[%s1 + $0x10] sm:$0xf]
    %v55 = vld [vmem:[%s1 + $0x14] sm:$0xf]
    %v56 = vld [vmem:[%s1 + $0x18] sm:$0xf]
    %v57 = vld [vmem:[%s1 + $0x1c] sm:$0xf]
    %v58 = vld [vmem:[%s1 + $0x20] sm:$0xf]
    %v59 = vld [vmem:[%s1 + $0x24] sm:$0xf]
    %v60 = vld [vmem:[%s1 + $0x28] sm:$0xf]
    %v61 = vld [vmem:[%s1 + $0x2c] sm:$0xf]
    %v62 = vld [vmem:[%s1 + $0x30] sm:$0xf]
    %v63 = vld [vmem:[%s1 + $0x34] sm:$0xf]
    %v64 = vld [vmem:[%s1 + $0x38] sm:$0xf]
    %v65 = vld [vmem:[%s1 + $0x3c] sm:$0xf]
    %v66 = vld [vmem:[%s1 + $0x40] sm:$0xf]
    %v67 = vld [vmem:[%s1 + $0x44] sm:$0xf]
    %v68 = vld [vmem:[%s1 + $0x48] sm:$0xf]
    %v69 = vld [vmem:[%s1 + $0x4c] sm:$0xf]
    %v70 = vld [vmem:[%s1 + $0x50] sm:$0xf]
    %v71 = vld [vmem:[%s1 + $0x54] sm:$0xf]
    %v72 = vld [vmem:[%s1 + $0x58] sm:$0xf]
    %v73 = vld [vmem:[%s1 + $0x5c] sm:$0xf]
    %v74 = vld [vmem:[%s1 + $0x60] sm:$0xf]
    %v75 = vld [vmem:[%s1 + $0x64] sm:$0xf]
    %v76 = vld [vmem:[%s1 + $0x68] sm:$0xf]
    %v77 = vld [vmem:[%s1 + $0x6c] sm:$0xf]
    %v78 = vld [vmem:[%s1 + $0x70] sm:$0xf]
    %v79 = vld [vmem:[%s1 + $0x74] sm:$0xf]
    %v80 = vld [vmem:[%s1 + $0x78] sm:$0xf]
    %v81 = vld [vmem:[%s1 + $0x7c] sm:$0xf]
    %v82 = vld [vmem:[%s2] sm:$0x1]
    %v84 = vlaneseq
    %v85 = vshrl.u32 %v84, 7
    %v86 = vsub.s32 0, %v85
    %v87 = vrot.slane %v82, %v86
    %v121 = vunpack.c.l.b16 %v50
    %v122 = vunpack.c.l.b16 %v51
    %v123 = vunpack.c.l.b16 %v52
    %v124 = vunpack.c.l.b16 %v53
    %v125 = vunpack.c.l.b16 %v54
    %v126 = vunpack.c.l.b16 %v55
    %v127 = vunpack.c.l.b16 %v56
    %v128 = vunpack.c.l.b16 %v57
    %v129 = vunpack.c.l.b16 %v58
    %v130 = vunpack.c.l.b16 %v59
    %v131 = vunpack.c.l.b16 %v60
    %v132 = vunpack.c.l.b16 %v61
    %v133 = vunpack.c.l.b16 %v62
    %v134 = vunpack.c.l.b16 %v63
    %v135 = vunpack.c.l.b16 %v64
    %v136 = vunpack.c.l.b16 %v65
    %v137 = vunpack.c.l.b16 %v66
    %v138 = vunpack.c.l.b16 %v67
    %v139 = vunpack.c.l.b16 %v68
    %v140 = vunpack.c.l.b16 %v69
    %v141 = vunpack.c.l.b16 %v70
    %v142 = vunpack.c.l.b16 %v71
    %v143 = vunpack.c.l.b16 %v72
    %v144 = vunpack.c.l.b16 %v73
    %v145 = vunpack.c.l.b16 %v74
    %v146 = vunpack.c.l.b16 %v75
    %v147 = vunpack.c.l.b16 %v76
    %v148 = vunpack.c.l.b16 %v77
    %v149 = vunpack.c.l.b16 %v78
    %v150 = vunpack.c.l.b16 %v79
    %v151 = vunpack.c.l.b16 %v80
    %v152 = vunpack.c.l.b16 %v81
    %v153 = vpack.c.b16 %v122, %v121
    %v154 = vpack.c.b16 %v124, %v123
    %v155 = vpack.c.b16 %v126, %v125
    %v156 = vpack.c.b16 %v128, %v127
    %v157 = vpack.c.b16 %v130, %v129
    %v158 = vpack.c.b16 %v132, %v131
    %v159 = vpack.c.b16 %v134, %v133
    %v160 = vpack.c.b16 %v136, %v135
    %v161 = vpack.c.b16 %v138, %v137
    %v162 = vpack.c.b16 %v140, %v139
    %v163 = vpack.c.b16 %v142, %v141
    %v164 = vpack.c.b16 %v144, %v143
    %v165 = vpack.c.b16 %v146, %v145
    %v166 = vpack.c.b16 %v148, %v147
    %v167 = vpack.c.b16 %v150, %v149
    %v168 = vpack.c.b16 %v152, %v151
    %185 = vmatprep.subr.bf16.mxu0 0
    %186 = vmatpush1.bf16.msra.mxu0 %v160
    %187 = vmatprep.subr.bf16.mxu0 0
    %188 = vmatpush1.bf16.msra.mxu0 %v159
    %189 = vmatprep.subr.bf16.mxu0 0
    %190 = vmatpush1.bf16.msra.mxu0 %v158
    %191 = vmatprep.subr.bf16.mxu0 0
    %192 = vmatpush1.bf16.msra.mxu0 %v157
    %193 = vmatprep.subr.bf16.mxu0 0
    %194 = vmatpush1.bf16.msra.mxu0 %v156
    %195 = vmatprep.subr.bf16.mxu0 0
    %196 = vmatpush1.bf16.msra.mxu0 %v155
    %197 = vmatprep.subr.bf16.mxu0 0
    %198 = vmatpush1.bf16.msra.mxu0 %v154
    %199 = vmatprep.subr.bf16.mxu0 0
    %200 = vmatpush1.bf16.msra.mxu0 %v153
    %201 = vmatprep.subr.bf16.mxu0 0
    %202 = vmatpush2.bf16.msra.mxu0 %v168
    %203 = vmatprep.subr.bf16.mxu0 0
    %204 = vmatpush2.bf16.msra.mxu0 %v167
    %205 = vmatprep.subr.bf16.mxu0 0
    %206 = vmatpush2.bf16.msra.mxu0 %v166
    %207 = vmatprep.subr.bf16.mxu0 0
    %208 = vmatpush2.bf16.msra.mxu0 %v165
    %209 = vmatprep.subr.bf16.mxu0 0
    %210 = vmatpush2.bf16.msra.mxu0 %v164
    %211 = vmatprep.subr.bf16.mxu0 0
    %212 = vmatpush2.bf16.msra.mxu0 %v163
    %213 = vmatprep.subr.bf16.mxu0 0
    %214 = vmatpush2.bf16.msra.mxu0 %v162
    %215 = vmatprep.subr.bf16.mxu0 0
    %216 = vmatpush2.bf16.msra.mxu0 %v161
    %217 = vmatprep.mubr.bf16.mxu0 %v49
    %218 = vmatmul.mubr.bf16.gmra.mxu0 %v48
    %v219 = vpop.f32.mrf.mxu0
    %v220 = vadd.f32 %v87, %v219
    %v221 = vpop.f32.mrf.mxu0
    %v222 = vpop.f32.mrf.mxu0
    %v223 = vpop.f32.mrf.mxu0
    %224 = vdwg.mxu0
    %v225 = vmax.f32 %v220, 0.0
    %v226 = vpack.c.bf16 %v225, %v225
    %v227 = vld [vmem:[%s3] sm:$0xf]
    %v228 = vld [vmem:[%s3 + $0x4] sm:$0xf]
    %v229 = vld [vmem:[%s3 + $0x8] sm:$0xf]
    %v230 = vld [vmem:[%s3 + $0xc] sm:$0xf]
    %v231 = vld [vmem:[%s4] sm:$0x1]
    %v233 = vlaneseq
    %v234 = vshrl.u32 %v233, 7
    %v235 = vsub.s32 0, %v234
    %v236 = vrot.slane %v231, %v235
    %v242 = vunpack.c.l.b16 %v227
    %v243 = vunpack.c.l.b16 %v228
    %v244 = vunpack.c.l.b16 %v229
    %v245 = vunpack.c.l.b16 %v230
    %v246 = vpack.c.b16 %v243, %v242
    %v247 = vpack.c.b16 %v245, %v244
    %vm250 = vcmask 261120
    %v252 = vsel %vm250, %v226, 0
    %254 = vmatprep.subr.bf16.mxu0 0
    %255 = vmatpush1.bf16.msra.mxu0 0
    %256 = vmatprep.subr.bf16.mxu0 0
    %257 = vmatpush1.bf16.msra.mxu0 0
    %258 = vmatprep.subr.bf16.mxu0 0
    %259 = vmatpush1.bf16.msra.mxu0 0
    %260 = vmatprep.subr.bf16.mxu0 0
    %261 = vmatpush1.bf16.msra.mxu0 0
    %262 = vmatprep.subr.bf16.mxu0 0
    %263 = vmatpush1.bf16.msra.mxu0 0
    %264 = vmatprep.subr.bf16.mxu0 0
    %265 = vmatpush1.bf16.msra.mxu0 0
    %266 = vmatprep.subr.bf16.mxu0 0
    %267 = vmatpush1.bf16.msra.mxu0 %v247
    %268 = vmatprep.subr.bf16.mxu0 0
    %269 = vmatpush1.bf16.msra.mxu0 %v246
    %270 = vmatprep.subr.bf16.mxu0 0
    %271 = vmatpush2.bf16.msra.mxu0 0
    %272 = vmatprep.subr.bf16.mxu0 0
    %273 = vmatpush2.bf16.msra.mxu0 0
    %274 = vmatprep.subr.bf16.mxu0 0
    %275 = vmatpush2.bf16.msra.mxu0 0
    %276 = vmatprep.subr.bf16.mxu0 0
    %277 = vmatpush2.bf16.msra.mxu0 0
    %278 = vmatprep.subr.bf16.mxu0 0
    %279 = vmatpush2.bf16.msra.mxu0 0
    %280 = vmatprep.subr.bf16.mxu0 0
    %281 = vmatpush2.bf16.msra.mxu0 0
    %282 = vmatprep.subr.bf16.mxu0 0
    %283 = vmatpush2.bf16.msra.mxu0 0
    %284 = vmatprep.subr.bf16.mxu0 0
    %285 = vmatpush2.bf16.msra.mxu0 0
    %286 = vmatprep.mubr.bf16.mxu0 0
    %287 = vmatmul.mubr.bf16.gmra.mxu0 %v252
    %v288 = vpop.f32.mrf.mxu0
    %v289 = vadd.f32 %v236, %v288
    %v290 = vpop.f32.mrf.mxu0
    %v291 = vpop.f32.mrf.mxu0
    %v292 = vpop.f32.mrf.mxu0
    %293 = vdwg.mxu0
    %v294 = vpack.c.bf16 %v289, %v289
    %v295 = vld [vmem:[%s5] sm:$0xf]
    %v296 = vld [vmem:[%s6] sm:$0x1]
    %v298 = vlaneseq
    %v299 = vshrl.u32 %v298, 7
    %v300 = vsub.s32 0, %v299
    %v301 = vrot.slane %v296, %v300
    %vm303 = vcmask 64512
    %v305 = vsel %vm303, %v294, 0
    %vm307 = vcmask 1043456
    %v309 = vsel %vm307, %v295, 0
    %311 = vmatprep.subr.bf16.mxu0 0
    %312 = vmatpush1.bf16.msra.mxu0 0
    %313 = vmatprep.subr.bf16.mxu0 0
    %314 = vmatpush1.bf16.msra.mxu0 0
    %315 = vmatprep.subr.bf16.mxu0 0
    %316 = vmatpush1.bf16.msra.mxu0 0
    %317 = vmatprep.subr.bf16.mxu0 0
    %318 = vmatpush1.bf16.msra.mxu0 0
    %319 = vmatprep.subr.bf16.mxu0 0
    %320 = vmatpush1.bf16.msra.mxu0 0
    %321 = vmatprep.subr.bf16.mxu0 0
    %322 = vmatpush1.bf16.msra.mxu0 0
    %323 = vmatprep.subr.bf16.mxu0 0
    %324 = vmatpush1.bf16.msra.mxu0 0
    %325 = vmatprep.subr.bf16.mxu0 0
    %326 = vmatpush1.bf16.msra.mxu0 %v309
    %327 = vmatprep.subr.bf16.mxu0 0
    %328 = vmatpush2.bf16.msra.mxu0 0
    %329 = vmatprep.subr.bf16.mxu0 0
    %330 = vmatpush2.bf16.msra.mxu0 0
    %331 = vmatprep.subr.bf16.mxu0 0
    %332 = vmatpush2.bf16.msra.mxu0 0
    %333 = vmatprep.subr.bf16.mxu0 0
    %334 = vmatpush2.bf16.msra.mxu0 0
    %335 = vmatprep.subr.bf16.mxu0 0
    %336 = vmatpush2.bf16.msra.mxu0 0
    %337 = vmatprep.subr.bf16.mxu0 0
    %338 = vmatpush2.bf16.msra.mxu0 0
    %339 = vmatprep.subr.bf16.mxu0 0
    %340 = vmatpush2.bf16.msra.mxu0 0
    %341 = vmatprep.subr.bf16.mxu0 0
    %342 = vmatpush2.bf16.msra.mxu0 0
    %343 = vmatprep.mubr.bf16.mxu0 0
    %344 = vmatmul.mubr.bf16.gmra.mxu0 %v305
    %v345 = vpop.f32.mrf.mxu0
    %v346 = vadd.f32 %v301, %v345
    %v347 = vpop.f32.mrf.mxu0
    %v348 = vpop.f32.mrf.mxu0
    %v349 = vpop.f32.mrf.mxu0
    %350 = vdwg.mxu0
    %v351 = vmax.f32 %v346, 0.0
    %v352 = vpack.c.bf16 %v351, %v351
    %v353 = vld [vmem:[%s7] sm:$0xff]
    %v354 = vld [vmem:[%s7 + $0x8] sm:$0xff]
    %v355 = vld [vmem:[%s7 + $0x10] sm:$0xff]
    %v356 = vld [vmem:[%s7 + $0x18] sm:$0xff]
    %v357 = vld [vmem:[%s8] sm:$0x3]
    %v359 = vlaneseq
    %v360 = vshrl.u32 %v359, 7
    %v361 = vsub.s32 0, %v360
    %v362 = vrot.slane %v357, %v361
    %v363 = vlaneseq
    %v364 = vshrl.u32 %v363, 7
    %v365 = vsub.s32 1, %v364
    %v366 = vrot.slane %v357, %v365
    %v373 = vunpack.c.l.b16 %v353
    %v374 = vunpack.c.h.b16 %v353
    %v375 = vunpack.c.l.b16 %v354
    %v376 = vunpack.c.h.b16 %v354
    %v377 = vunpack.c.l.b16 %v355
    %v378 = vunpack.c.h.b16 %v355
    %v379 = vunpack.c.l.b16 %v356
    %v380 = vunpack.c.h.b16 %v356
    %v381 = vpack.c.b16 %v375, %v373
    %v382 = vpack.c.b16 %v376, %v374
    %v383 = vpack.c.b16 %v379, %v377
    %v384 = vpack.c.b16 %v380, %v378
    %v390 = vsel %vm250, %v352, 0
    %392 = vmatprep.subr.bf16.mxu0 0
    %393 = vmatpush1.bf16.msra.mxu0 0
    %394 = vmatprep.subr.bf16.mxu0 0
    %395 = vmatpush1.bf16.msra.mxu0 0
    %396 = vmatprep.subr.bf16.mxu0 0
    %397 = vmatpush1.bf16.msra.mxu0 0
    %398 = vmatprep.subr.bf16.mxu0 0
    %399 = vmatpush1.bf16.msra.mxu0 0
    %400 = vmatprep.subr.bf16.mxu0 0
    %401 = vmatpush1.bf16.msra.mxu0 0
    %402 = vmatprep.subr.bf16.mxu0 0
    %403 = vmatpush1.bf16.msra.mxu0 0
    %404 = vmatprep.subr.bf16.mxu0 %v384
    %405 = vmatpush1.bf16.msra.mxu0 %v383
    %406 = vmatprep.subr.bf16.mxu0 %v382
    %407 = vmatpush1.bf16.msra.mxu0 %v381
    %408 = vmatprep.subr.bf16.mxu0 0
    %409 = vmatpush2.bf16.msra.mxu0 0
    %410 = vmatprep.subr.bf16.mxu0 0
    %411 = vmatpush2.bf16.msra.mxu0 0
    %412 = vmatprep.subr.bf16.mxu0 0
    %413 = vmatpush2.bf16.msra.mxu0 0
    %414 = vmatprep.subr.bf16.mxu0 0
    %415 = vmatpush2.bf16.msra.mxu0 0
    %416 = vmatprep.subr.bf16.mxu0 0
    %417 = vmatpush2.bf16.msra.mxu0 0
    %418 = vmatprep.subr.bf16.mxu0 0
    %419 = vmatpush2.bf16.msra.mxu0 0
    %420 = vmatprep.subr.bf16.mxu0 0
    %421 = vmatpush2.bf16.msra.mxu0 0
    %422 = vmatprep.subr.bf16.mxu0 0
    %423 = vmatpush2.bf16.msra.mxu0 0
    %424 = vmatprep.mubr.bf16.mxu0 0
    %425 = vmatmul.mubr.bf16.gmra.mxu0 %v390
    %v426 = vpop.f32.mrf.mxu0
    %v427 = vadd.f32 %v362, %v426
    %v428 = vpop.f32.mrf.mxu0
    %v429 = vadd.f32 %v366, %v428
    %v430 = vpop.f32.mrf.mxu0
    %v431 = vpop.f32.mrf.mxu0
    %432 = vdwg.mxu0
    %v433 = vsub.f32 0.0, %v427
    %v434 = vsub.f32 0.0, %v429
    %v435 = vmul.f32 %v433, 1.442695
    %v436 = vpow.pop %v435
    %v437 = vmul.f32 %v434, 1.442695
    %v438 = vpow.pop %v437
    %v439 = vadd.f32 %v436, 1.0
    %v440 = vadd.f32 %v438, 1.0
    %v441 = vrcp.pop %v439
    %v442 = vrcp.pop %v440
    %v445 = vcombine.low %v441, %v442
    %v447 = vunpack.c.l.s4 1983009808
    %v448 = vunpack.c.0.s8 %v447
    %v449 = vlaneseq
    %v450 = vshrl.u32 %v449, 7
    %v451 = vsub.s32 %v448, %v450
    %v452 = vrot.slane %v445, %v451
    %454 = vst [vmem:[%s9] sm:$0xf] %v452
    %vm455 = vcmask 58368
    %456 = vst.msk [vmem:[#allocation2] sm:$0x3] %vm455, %v289
    // Predicated region
    $region38: #{forward_ae.1} parent=1 // pred_check
      _
    $region39: #{forward_ae.1} parent=1 // pred_check_branch
      %458 = sbr.rel (0) target = $region41
    $region40: #{forward_ae.1} parent=1 // pred_region
      _
    $region41: #{forward_ae.1} parent=1 // pred_fallthru
      _
    // Predicated region
    $region42: #{forward_ae.1} parent=1 // pred_check
      _
    $region43: #{forward_ae.1} parent=1 // pred_check_branch
      %460 = sbr.rel (0) target = $region45
    $region44: #{forward_ae.1} parent=1 // pred_region
      %s462 = ssub.s32 32, 32
      %463 = vsyncadd [#allocation3], %s462
      %s465 = sshll.u32 [#allocation2], 4
      %s466 = int_to_ptr.vmem [resolvable:$true] %s465
      %468 = dma.vmem_to_hbm [thread:$0]  %s466, 32, %s10, [#allocation3]
    $region45: #{forward_ae.1} parent=1 // pred_fallthru
      _
    // Predicated region
    $region46: #{forward_ae.1} parent=1 // pred_check
      _
    $region47: #{forward_ae.1} parent=1 // pred_check_branch
      %470 = sbr.rel (0) target = $region49
    $region48: #{forward_ae.1} parent=1 // pred_region
      _
    $region49: #{forward_ae.1} parent=1 // pred_fallthru
      _
    // Predicated region
    $region50: #{forward_ae.1} parent=1 // pred_check
      _
    $region51: #{forward_ae.1} parent=1 // pred_check_branch
      %472 = sbr.rel (0) target = $region53
    $region52: #{forward_ae.1} parent=1 // pred_region
      %473 = dma.done [#allocation3], 32
    $region53: #{forward_ae.1} parent=1 // pred_fallthru
      _
    %474 = vsyncpa [#allocation3], 1

</llo_original>
